<compile_context>
chip_gen: v5e
topology: v5e:2x2
jax: 0.10.0
libtpu: 0.0.40
codegen_flags: <defaults>
</compile_context>

<pallas_src>
import math

import jax
import jax.numpy as jnp
from jax.experimental import pallas as pl
from jax.experimental.pallas import tpu as pltpu


# ---------------------------------------------------------------------------
# Kernels
# ---------------------------------------------------------------------------

def _concat_dma_kernel(*refs):
    """Pure HBM->HBM concat: one async copy per input into its column slice."""
    n = len(refs) - 2                 # n inputs, 1 output, 1 DMA-semaphore array
    x_refs = refs[:n]
    o_ref = refs[n]
    sem = refs[n + 1]

    copies = []
    off = 0
    for i, x_ref in enumerate(x_refs):
        k = x_ref.shape[-1]
        cp = pltpu.make_async_copy(x_ref, o_ref.at[:, off:off + k], sem.at[i])
        cp.start()
        copies.append(cp)
        off += k
    for cp in copies:
        cp.wait()


def _concat_copy_kernel(*refs):
    """Tiled VMEM copy: each input tile into its (128-aligned) column slice."""
    *x_refs, o_ref = refs
    off = 0
    for x_ref in x_refs:
        k = x_ref.shape[-1]
        o_ref[:, off:off + k] = x_ref[...]
        off += k


# ---------------------------------------------------------------------------
# Dispatch helpers
# ---------------------------------------------------------------------------

def _vmem_capacity_bytes():
    try:
        return int(pltpu.get_tpu_info().vmem_capacity_bytes)
    except Exception:
        return 64 * 1024 * 1024       # conservative fallback (v7x per-TC VMEM)


def _concat_dma(xs_2d, M, k_total, dtype):
    n = len(xs_2d)
    return pl.pallas_call(
        _concat_dma_kernel,
        out_shape=jax.ShapeDtypeStruct((M, k_total), dtype),
        in_specs=[pl.BlockSpec(memory_space=pl.ANY)] * n,
        out_specs=pl.BlockSpec(memory_space=pl.ANY),
        scratch_shapes=[pltpu.SemaphoreType.DMA((n,))],
    )(*xs_2d)


def _in_spec(tm, k, n_steps):
    idx_map = lambda i: (i, 0)
    if n_steps >= 3:
        try:  # 3-deep input pipeline helps hide DMA issue latency (mem-bound copy)
            return pl.BlockSpec((tm, k), idx_map, pipeline_mode=pl.Buffered(3))
        except TypeError:
            pass
    return pl.BlockSpec((tm, k), idx_map)


def _concat_tiled(xs_2d, widths, M, k_total, dtype, sub, vmem_budget, vmem_cap):
    itemsize = jnp.dtype(dtype).itemsize
    # Per-step VMEM: ~3-buffered inputs + double-buffered output = 5*tm*K*item.
    bytes_per_row = 5 * k_total * itemsize
    tm_budget = max(sub, (vmem_budget // bytes_per_row) // sub * sub)
    tm_target = max(sub, (M // 4) // sub * sub)   # >=4 grid steps (>=2 per TC on v7x)
    tm = min(tm_budget, tm_target)

    grid = (pl.cdiv(M, tm),)
    n_steps = grid[0]

    usage = bytes_per_row * tm
    vmem_limit = max(32 * 1024 * 1024,
                     min(int(vmem_cap * 0.85), usage + 8 * 1024 * 1024))

    return pl.pallas_call(
        _concat_copy_kernel,
        out_shape=jax.ShapeDtypeStruct((M, k_total), dtype),
        grid=grid,
        in_specs=[_in_spec(tm, k, n_steps) for k in widths],
        out_specs=pl.BlockSpec((tm, k_total), lambda i: (i, 0)),
        compiler_params=pltpu.CompilerParams(
            dimension_semantics=("parallel",),
            vmem_limit_bytes=int(vmem_limit),
        ),
    )(*xs_2d)


# ---------------------------------------------------------------------------
# Public wrapper (== Concat.forward == torch.cat(xs, dim))
# ---------------------------------------------------------------------------

def concat(xs, dimension=1):
    xs = list(xs)
    assert len(xs) >= 1
    rank = xs[0].ndim
    d = dimension % rank
    lead_shape = tuple(xs[0].shape[:d])
    tail_shape = tuple(xs[0].shape[d + 1:])
    for x in xs:
        assert x.ndim == rank
        assert tuple(x.shape[:d]) == lead_shape
        assert tuple(x.shape[d + 1:]) == tail_shape

    dtype = jnp.result_type(*xs)
    xs = [x if x.dtype == dtype else x.astype(dtype) for x in xs]

    out_d = sum(int(x.shape[d]) for x in xs)
    out_shape_full = lead_shape + (out_d,) + tail_shape

    # Zero-width operands contribute nothing.
    xs = [x for x in xs if int(x.shape[d]) > 0]

    M = int(math.prod(lead_shape)) if lead_shape else 1
    T = int(math.prod(tail_shape)) if tail_shape else 1
    if not xs or M == 0 or T == 0:
        return jnp.zeros(out_shape_full, dtype)
    if len(xs) == 1:
        return xs[0].reshape(out_shape_full)

    widths = [int(x.shape[d]) * T for x in xs]
    k_total = sum(widths)
    xs_2d = [x.reshape(M, k) for x, k in zip(xs, widths)]
    itemsize = jnp.dtype(dtype).itemsize

    # Per-generation VMEM budget (128 MiB on v5e/v6e, 64 MiB per TC on v7x).
    vmem_cap = _vmem_capacity_bytes()
    vmem_budget = (80 * 1024 * 1024 if vmem_cap >= 100 * 1024 * 1024
                   else 24 * 1024 * 1024)

    # Dtype-dependent sublane multiple (bf16 packs 16 rows/vreg, int8 packs 32).
    sub = {1: 32, 2: 16}.get(itemsize, 8)

    lane_aligned = all(k % 128 == 0 for k in widths)
    min_block_bytes = 5 * sub * k_total * itemsize
    use_tiled = lane_aligned and M >= 4 * sub and min_block_bytes <= vmem_budget

    if use_tiled:
        out_2d = _concat_tiled(xs_2d, widths, M, k_total, dtype, sub,
                               vmem_budget, vmem_cap)
    else:
        out_2d = _concat_dma(xs_2d, M, k_total, dtype)

    return out_2d.reshape(out_shape_full)


if __name__ == "__main__":
    key = jax.random.PRNGKey(0)
    keys = jax.random.split(key, 8)

    # Case 1: three NCHW feature maps, concat along channels (dim=1).
    # M = 2 (tiny) -> pure-DMA path.
    B, C, H, W = 2, 4, 16, 16
    x0 = jax.random.normal(keys[0], (B, C, H, W), dtype=jnp.float32)
    x1 = jax.random.normal(keys[1], (B, C, H, W), dtype=jnp.float32)
    x2 = jax.random.normal(keys[2], (B, C, H, W), dtype=jnp.float32)
    out = jax.block_until_ready(concat([x0, x1, x2], dimension=1))
    ref = jnp.concatenate([x0, x1, x2], axis=1)
    assert out.shape == (B, 3 * C, H, W)
    assert jnp.array_equal(out, ref)

    # Case 2: unequal channels and non-128-aligned widths (DMA path, odd shapes).
    a0 = jax.random.normal(keys[3], (2, 3, 5, 7), dtype=jnp.float32)
    a1 = jax.random.normal(keys[4], (2, 2, 5, 7), dtype=jnp.float32)
    out2 = jax.block_until_ready(concat([a0, a1], dimension=1))
    ref2 = jnp.concatenate([a0, a1], axis=1)
    assert out2.shape == ref2.shape
    assert jnp.array_equal(out2, ref2)

    # Case 3: last-dim concat, 128-aligned widths, M = 256 -> tiled VMEM path.
    b0 = jax.random.normal(keys[5], (2, 8, 16, 128), dtype=jnp.float32)
    b1 = jax.random.normal(keys[6], (2, 8, 16, 256), dtype=jnp.float32)
    out3 = jax.block_until_ready(concat([b0, b1], dimension=-1))
    ref3 = jnp.concatenate([b0, b1], axis=-1)
    assert out3.shape == ref3.shape
    assert jnp.array_equal(out3, ref3)

    # Case 4: bf16 (sublane multiple 16), tiled path.
    c0 = jax.random.normal(keys[7], (2, 8, 16, 128), dtype=jnp.float32).astype(jnp.bfloat16)
    c1 = (c0 * 2).astype(jnp.bfloat16)
    out4 = jax.block_until_ready(concat([c0, c1], dimension=3))
    ref4 = jnp.concatenate([c0, c1], axis=3)
    assert out4.shape == ref4.shape
    assert jnp.array_equal(out4, ref4)

    print("KERNEL_OK")
</pallas_src>

<mosaic_0001>
module attributes {stable_mosaic.version = 11 : i64} {
  func.func @_concat_dma_kernel(%arg0: memref<2x1024xf32, #tpu.memory_space<any>>, %arg1: memref<2x1024xf32, #tpu.memory_space<any>>, %arg2: memref<2x1024xf32, #tpu.memory_space<any>>, %arg3: memref<2x3072xf32, #tpu.memory_space<any>>, %arg4: memref<3x!tpu.dma_semaphore, #tpu.memory_space<semaphore_mem>>) attributes {dimension_semantics = [], scalar_prefetch = 0 : i64, scratch_operands = 1 : i64, tpu.core_type = #tpu.core_type<tc>} {
    %c0_i32 = arith.constant 0 : i32
    %c0_i32_0 = arith.constant 0 : i32
    %c0_i32_1 = arith.constant 0 : i32
    %0 = tpu.memref_slice %arg3[%c0_i32_0, %c0_i32_1] : memref<2x3072xf32, #tpu.memory_space<any>> -> memref<2x1024xf32, #tpu.memory_space<any>>
    %1 = tpu.memref_slice %arg4[%c0_i32] : memref<3x!tpu.dma_semaphore, #tpu.memory_space<semaphore_mem>> -> memref<1x!tpu.dma_semaphore, #tpu.memory_space<semaphore_mem>>
    %2 = tpu.memref_squeeze %1 : memref<1x!tpu.dma_semaphore, #tpu.memory_space<semaphore_mem>> -> memref<!tpu.dma_semaphore, #tpu.memory_space<semaphore_mem>>
    tpu.enqueue_dma source(%arg0 : memref<2x1024xf32, #tpu.memory_space<any>>) target(%0 : memref<2x1024xf32, #tpu.memory_space<any>>) target_semaphore(%2 : memref<!tpu.dma_semaphore, #tpu.memory_space<semaphore_mem>>)
    %c1_i32 = arith.constant 1 : i32
    %c0_i32_2 = arith.constant 0 : i32
    %c1024_i32 = arith.constant 1024 : i32
    %3 = tpu.memref_slice %arg3[%c0_i32_2, %c1024_i32] : memref<2x3072xf32, #tpu.memory_space<any>> -> memref<2x1024xf32, #tpu.memory_space<any>>
    %4 = tpu.memref_slice %arg4[%c1_i32] : memref<3x!tpu.dma_semaphore, #tpu.memory_space<semaphore_mem>> -> memref<1x!tpu.dma_semaphore, #tpu.memory_space<semaphore_mem>>
    %5 = tpu.memref_squeeze %4 : memref<1x!tpu.dma_semaphore, #tpu.memory_space<semaphore_mem>> -> memref<!tpu.dma_semaphore, #tpu.memory_space<semaphore_mem>>
    tpu.enqueue_dma source(%arg1 : memref<2x1024xf32, #tpu.memory_space<any>>) target(%3 : memref<2x1024xf32, #tpu.memory_space<any>>) target_semaphore(%5 : memref<!tpu.dma_semaphore, #tpu.memory_space<semaphore_mem>>)
    %c2_i32 = arith.constant 2 : i32
    %c0_i32_3 = arith.constant 0 : i32
    %c2048_i32 = arith.constant 2048 : i32
    %6 = tpu.memref_slice %arg3[%c0_i32_3, %c2048_i32] : memref<2x3072xf32, #tpu.memory_space<any>> -> memref<2x1024xf32, #tpu.memory_space<any>>
    %7 = tpu.memref_slice %arg4[%c2_i32] : memref<3x!tpu.dma_semaphore, #tpu.memory_space<semaphore_mem>> -> memref<1x!tpu.dma_semaphore, #tpu.memory_space<semaphore_mem>>
    %8 = tpu.memref_squeeze %7 : memref<1x!tpu.dma_semaphore, #tpu.memory_space<semaphore_mem>> -> memref<!tpu.dma_semaphore, #tpu.memory_space<semaphore_mem>>
    tpu.enqueue_dma source(%arg2 : memref<2x1024xf32, #tpu.memory_space<any>>) target(%6 : memref<2x1024xf32, #tpu.memory_space<any>>) target_semaphore(%8 : memref<!tpu.dma_semaphore, #tpu.memory_space<semaphore_mem>>)
    %c0_i32_4 = arith.constant 0 : i32
    %c0_i32_5 = arith.constant 0 : i32
    %c0_i32_6 = arith.constant 0 : i32
    %9 = tpu.memref_slice %arg3[%c0_i32_5, %c0_i32_6] : memref<2x3072xf32, #tpu.memory_space<any>> -> memref<2x1024xf32, #tpu.memory_space<any>>
    %10 = tpu.memref_slice %arg4[%c0_i32_4] : memref<3x!tpu.dma_semaphore, #tpu.memory_space<semaphore_mem>> -> memref<1x!tpu.dma_semaphore, #tpu.memory_space<semaphore_mem>>
    %11 = tpu.memref_squeeze %10 : memref<1x!tpu.dma_semaphore, #tpu.memory_space<semaphore_mem>> -> memref<!tpu.dma_semaphore, #tpu.memory_space<semaphore_mem>>
    tpu.wait_dma2 semaphore(%11 : memref<!tpu.dma_semaphore, #tpu.memory_space<semaphore_mem>>) src(%arg0 : memref<2x1024xf32, #tpu.memory_space<any>>) dst(%9 : memref<2x1024xf32, #tpu.memory_space<any>>)
    %c1_i32_7 = arith.constant 1 : i32
    %c0_i32_8 = arith.constant 0 : i32
    %c1024_i32_9 = arith.constant 1024 : i32
    %12 = tpu.memref_slice %arg3[%c0_i32_8, %c1024_i32_9] : memref<2x3072xf32, #tpu.memory_space<any>> -> memref<2x1024xf32, #tpu.memory_space<any>>
    %13 = tpu.memref_slice %arg4[%c1_i32_7] : memref<3x!tpu.dma_semaphore, #tpu.memory_space<semaphore_mem>> -> memref<1x!tpu.dma_semaphore, #tpu.memory_space<semaphore_mem>>
    %14 = tpu.memref_squeeze %13 : memref<1x!tpu.dma_semaphore, #tpu.memory_space<semaphore_mem>> -> memref<!tpu.dma_semaphore, #tpu.memory_space<semaphore_mem>>
    tpu.wait_dma2 semaphore(%14 : memref<!tpu.dma_semaphore, #tpu.memory_space<semaphore_mem>>) src(%arg1 : memref<2x1024xf32, #tpu.memory_space<any>>) dst(%12 : memref<2x1024xf32, #tpu.memory_space<any>>)
    %c2_i32_10 = arith.constant 2 : i32
    %c0_i32_11 = arith.constant 0 : i32
    %c2048_i32_12 = arith.constant 2048 : i32
    %15 = tpu.memref_slice %arg3[%c0_i32_11, %c2048_i32_12] : memref<2x3072xf32, #tpu.memory_space<any>> -> memref<2x1024xf32, #tpu.memory_space<any>>
    %16 = tpu.memref_slice %arg4[%c2_i32_10] : memref<3x!tpu.dma_semaphore, #tpu.memory_space<semaphore_mem>> -> memref<1x!tpu.dma_semaphore, #tpu.memory_space<semaphore_mem>>
    %17 = tpu.memref_squeeze %16 : memref<1x!tpu.dma_semaphore, #tpu.memory_space<semaphore_mem>> -> memref<!tpu.dma_semaphore, #tpu.memory_space<semaphore_mem>>
    tpu.wait_dma2 semaphore(%17 : memref<!tpu.dma_semaphore, #tpu.memory_space<semaphore_mem>>) src(%arg2 : memref<2x1024xf32, #tpu.memory_space<any>>) dst(%15 : memref<2x1024xf32, #tpu.memory_space<any>>)
    return
  }
}

</mosaic_0001>

<llo_original>
// kernel: tpu_custom_call.1
$region0: #{tpu_custom_call.1}
  #allocation0 [shape = 'u32[]', space=smem, size = 0x4, offset = 0x4, fixed_abs, tag = 'smem constant byte address 0x4 - core index']
  #allocation1 [shape = 'u32[72,128]{1,0:T(1,128)}', space=vmem, size = 0x9000, scoped, tag = 'internal scratch']
  #allocation2 [shape = 's32[3]{0}', space=sflag, size = 0xc, scoped, tag = 'scratch operand']
  #allocation3 [shape = 's32[]', space=sflag, size = 0x4, offset = 0, fixed_abs, tag = 'sflag constant byte address 0x0 - dummy sync flag']
  #allocation4 [shape = 'u32[0]{0}', space=smem, size = 0, offset = 0, fixed_abs, tag = 'smem constant byte address 0x0 - null']
  #allocation5 [shape = 's32[]', space=sflag, size = 0x4, offset = 0, fixed_abs, tag = 'sflag constant byte address 0x0 - dummy sync flag']
  #allocation6 [shape = 'u32[0]{0}', space=smem, size = 0, offset = 0, fixed_abs, tag = 'smem constant byte address 0x0 - null']
  #allocation7 [shape = 's32[]', space=sflag, size = 0x4, offset = 0, fixed_abs, tag = 'sflag constant byte address 0x0 - dummy sync flag']
  #allocation8 [shape = 'u32[0]{0}', space=smem, size = 0, offset = 0, fixed_abs, tag = 'smem constant byte address 0x0 - null']
  %s0 = inlined_call_operand.hbm [shape: f32[2,1024], index: 0, kind: input, shape index: {}]
  %s1 = inlined_call_operand.hbm [shape: f32[2,1024], index: 1, kind: input, shape index: {}]
  %s2 = inlined_call_operand.hbm [shape: f32[2,1024], index: 2, kind: input, shape index: {}]
  %s3 = inlined_call_operand.hbm [shape: f32[2,3072], index: 3, kind: output, shape index: {}]
  %s4 = sld [smem:[#allocation0]]
  $region2: #{tpu_custom_call.1} parent=0
    _
  %s6 = ssub.s32 1, %s4
  %s7 = scalar_select 0, %s6, %s4
  %s9 = sshll.u32 1, 14
  %s10 = sxor.u32 4294967295, %s9
  %s12 = sshll.u32 %s0, 4
  %s13 = int_to_ptr.hbm [resolvable:$true] %s12
  %s14 = sshll.u32 %s3, 4
  %s15 = int_to_ptr.hbm [resolvable:$true] %s14
  %18 = dma.general %s13, 256, %s15, [#allocation2], [#allocation3], [#allocation4], 0, 0
  %s19 = scalar_lea.hbm %s3, 16
  %s20 = scalar_lea.sflag [#allocation2], 1
  %s22 = sshll.u32 1, 14
  %s23 = sxor.u32 4294967295, %s22
  %s25 = sshll.u32 %s1, 4
  %s26 = int_to_ptr.hbm [resolvable:$true] %s25
  %s27 = sshll.u32 %s19, 4
  %s28 = int_to_ptr.hbm [resolvable:$true] %s27
  %31 = dma.general %s26, 256, %s28, %s20, [#allocation5], [#allocation6], 0, 0
  %s32 = scalar_lea.hbm %s3, 32
  %s33 = scalar_lea.sflag [#allocation2], 2
  %s35 = sshll.u32 1, 14
  %s36 = sxor.u32 4294967295, %s35
  %s38 = sshll.u32 %s2, 4
  %s39 = int_to_ptr.hbm [resolvable:$true] %s38
  %s40 = sshll.u32 %s32, 4
  %s41 = int_to_ptr.hbm [resolvable:$true] %s40
  %44 = dma.general %s39, 256, %s41, %s33, [#allocation7], [#allocation8], 0, 0
  %s45 = smul.u32 2, 1
  %s46 = smul.u32 %s45, 8
  %s47 = sshll.u32 %s46, 4
  %48 = dma.done [#allocation2], %s47
  %s49 = sshll.u32 %s46, 4
  %50 = dma.done %s20, %s49
  %s51 = sshll.u32 %s46, 4
  %52 = dma.done %s33, %s51
  %53 = vsyncmov [#allocation2]
  %s54 = vpop.sfrf %53
  %p55 = scmp.eq.s32.totalorder %s54, 0
  %p56 = pneg %p55
  %58 = shalt.err (%p56)
  %s59 = scalar_lea.sflag [#allocation2], 1
  %60 = vsyncmov %s59
  %s61 = vpop.sfrf %60
  %p62 = scmp.eq.s32.totalorder %s61, 0
  %p63 = pneg %p62
  %65 = shalt.err (%p63)
  %s66 = scalar_lea.sflag [#allocation2], 2
  %67 = vsyncmov %s66
  %s68 = vpop.sfrf %67
  %p69 = scmp.eq.s32.totalorder %s68, 0
  %p70 = pneg %p69
  %72 = shalt.err (%p70)

</llo_original>
